<compile_context>
chip_gen: v7x
topology: tpu7x:2x2x1
jax: 0.10.0
libtpu: 0.0.40
codegen_flags: <defaults>
</compile_context>

<pallas_src>
import functools

import jax
import jax.numpy as jnp
from jax.experimental import pallas as pl
from jax.experimental.pallas import tpu as pltpu


def _round_up(n, m):
    return ((n + m - 1) // m) * m


def _pad2(a, rows, cols):
    r, c = a.shape
    return jnp.pad(a, ((0, rows - r), (0, cols - c)))


def _vmem_limit(nbytes):
    # 2x headroom over the raw footprint, clamped to [16 MiB, 48 MiB] which is
    # safe across v5e / v6e / v7x scoped-VMEM budgets.
    return int(min(max(2 * nbytes + (4 << 20), 16 << 20), 48 << 20))


def _pad_params(params, Ip, Hp, Op):
    wi, bi, wh, bh, wo, bo = params
    return (
        _pad2(wi, Ip, Hp),
        _pad2(bi + bh, 1, Hp),   # fused bias (bi + bh)
        _pad2(wh, Hp, Hp),
        _pad2(wo, Hp, Op),
        _pad2(bo, 1, Op),
    )


# ---------------------------------------------------------------------------
# Kernel 1: fused, time-chunked recurrence.
#   grid=(T_pad//TT,). Per chunk: one batched i2h matmul over TT timesteps,
#   then TT unrolled serial steps of h = tanh(pre[t] + h @ wh).
#   Hidden state carried in VMEM scratch; wi/bf/wh resident across all chunks.
# ---------------------------------------------------------------------------
def _rnn_seq_kernel(x_ref, h0_ref, wi_ref, bf_ref, wh_ref, hseq_ref, h_scr):
    TT, Bp, Ip = x_ref.shape
    Hp = wh_ref.shape[1]

    @pl.when(pl.program_id(0) == 0)
    def _():
        h_scr[...] = h0_ref[...]

    # i2h for the whole chunk in ONE MXU pass (no pre_i HBM round-trip).
    # (TT, Bp, Ip) -> (TT*Bp, Ip) is layout-free because Bp is a multiple of 8.
    pre = (
        jnp.dot(x_ref[...].reshape(TT * Bp, Ip), wi_ref[...],
                preferred_element_type=jnp.float32)
        + bf_ref[...]
    ).reshape(TT, Bp, Hp)

    # Serial recurrence over the TT steps, fully unrolled (static trip count,
    # visible to the LLO scheduler).
    h = h_scr[...]
    for t in range(TT):
        h = jnp.tanh(pre[t] + jnp.dot(h, wh_ref[...],
                                      preferred_element_type=jnp.float32))
        hseq_ref[t] = h
    h_scr[...] = h


def _rnn_recurrence(x_p, h0_p, wi_p, bf_p, wh_p, tt):
    T_pad, Bp, Ip = x_p.shape
    Hp = wh_p.shape[1]
    n_chunks = T_pad // tt

    resident = (Ip * Hp + Hp * Hp + Hp + 2 * Bp * Hp) * 4
    streamed = 2 * tt * Bp * (Ip + Hp) * 4       # double-buffered x + hseq chunks

    grid_spec = pltpu.PrefetchScalarGridSpec(
        num_scalar_prefetch=0,
        grid=(n_chunks,),
        in_specs=[
            pl.BlockSpec((tt, Bp, Ip), lambda c: (c, 0, 0)),   # x chunk (streamed)
            pl.BlockSpec((Bp, Hp), lambda c: (0, 0)),          # h0 (resident)
            pl.BlockSpec((Ip, Hp), lambda c: (0, 0)),          # wi (resident)
            pl.BlockSpec((1, Hp), lambda c: (0, 0)),           # bi+bh (resident)
            pl.BlockSpec((Hp, Hp), lambda c: (0, 0)),          # wh (resident)
        ],
        out_specs=pl.BlockSpec((tt, Bp, Hp), lambda c: (c, 0, 0)),  # all hidden states
        scratch_shapes=[pltpu.VMEM((Bp, Hp), jnp.float32)],         # carried h
    )
    return pl.pallas_call(
        _rnn_seq_kernel,
        out_shape=jax.ShapeDtypeStruct((T_pad, Bp, Hp), jnp.float32),
        grid_spec=grid_spec,
        compiler_params=pltpu.CompilerParams(
            dimension_semantics=("arbitrary",),
            vmem_limit_bytes=_vmem_limit(resident + streamed)),
    )(x_p, h0_p, wi_p, bf_p, wh_p)


# ---------------------------------------------------------------------------
# Kernel 2: h2o on the final hidden state only (wo/bo no longer sit resident
# in the recurrence kernel's VMEM).
# ---------------------------------------------------------------------------
def _h2o_kernel(h_ref, wo_ref, bo_ref, out_ref):
    out_ref[...] = (
        jnp.dot(h_ref[...], wo_ref[...], preferred_element_type=jnp.float32)
        + bo_ref[...]
    )


def _h2o(h_p, wo_p, bo_p):
    Bp, Hp = h_p.shape
    Op = wo_p.shape[1]
    nbytes = (Bp * Hp + Hp * Op + Op + Bp * Op) * 4
    return pl.pallas_call(
        _h2o_kernel,
        out_shape=jax.ShapeDtypeStruct((Bp, Op), jnp.float32),
        in_specs=[
            pl.BlockSpec((Bp, Hp), lambda: (0, 0)),
            pl.BlockSpec((Hp, Op), lambda: (0, 0)),
            pl.BlockSpec((1, Op), lambda: (0, 0)),
        ],
        out_specs=pl.BlockSpec((Bp, Op), lambda: (0, 0)),
        compiler_params=pltpu.CompilerParams(
            vmem_limit_bytes=_vmem_limit(nbytes)),
    )(h_p, wo_p, bo_p)


# ---------------------------------------------------------------------------
# Kernel 3: dedicated fused single-step forward (i2h + h2h + tanh + h2o).
# ---------------------------------------------------------------------------
def _rnn_step_kernel(x_ref, h_ref, wi_ref, bf_ref, wh_ref, wo_ref, bo_ref,
                     out_ref, hnew_ref):
    h_new = jnp.tanh(
        jnp.dot(x_ref[...], wi_ref[...], preferred_element_type=jnp.float32)
        + bf_ref[...]
        + jnp.dot(h_ref[...], wh_ref[...], preferred_element_type=jnp.float32))
    hnew_ref[...] = h_new
    out_ref[...] = (
        jnp.dot(h_new, wo_ref[...], preferred_element_type=jnp.float32)
        + bo_ref[...]
    )


def _rnn_step(x_p, h_p, wi_p, bf_p, wh_p, wo_p, bo_p):
    Bp, Ip = x_p.shape
    Hp = wh_p.shape[1]
    Op = wo_p.shape[1]
    nbytes = (Bp * Ip + Bp * Hp + Ip * Hp + Hp + Hp * Hp
              + Hp * Op + Op + Bp * Op + Bp * Hp) * 4
    return pl.pallas_call(
        _rnn_step_kernel,
        out_shape=(jax.ShapeDtypeStruct((Bp, Op), jnp.float32),
                   jax.ShapeDtypeStruct((Bp, Hp), jnp.float32)),
        in_specs=[
            pl.BlockSpec((Bp, Ip), lambda: (0, 0)),
            pl.BlockSpec((Bp, Hp), lambda: (0, 0)),
            pl.BlockSpec((Ip, Hp), lambda: (0, 0)),
            pl.BlockSpec((1, Hp), lambda: (0, 0)),
            pl.BlockSpec((Hp, Hp), lambda: (0, 0)),
            pl.BlockSpec((Hp, Op), lambda: (0, 0)),
            pl.BlockSpec((1, Op), lambda: (0, 0)),
        ],
        out_specs=(pl.BlockSpec((Bp, Op), lambda: (0, 0)),
                   pl.BlockSpec((Bp, Hp), lambda: (0, 0))),
        compiler_params=pltpu.CompilerParams(
            vmem_limit_bytes=_vmem_limit(nbytes)),
    )(x_p, h_p, wi_p, bf_p, wh_p, wo_p, bo_p)


# ---------------------------------------------------------------------------
# Wrappers
# ---------------------------------------------------------------------------
@jax.jit
def rnn_forward(x, h, params):
    """Single-step forward == RNN.forward(input, hidden_state)."""
    B, I = x.shape
    H = h.shape[1]
    O = params[4].shape[1]
    Bp, Ip = _round_up(B, 8), _round_up(I, 128)
    Hp, Op = _round_up(H, 128), _round_up(O, 128)

    wi_p, bf_p, wh_p, wo_p, bo_p = _pad_params(params, Ip, Hp, Op)
    x_p = _pad2(x, Bp, Ip)
    h_p = _pad2(h, Bp, Hp)

    out_p, hnew_p = _rnn_step(x_p, h_p, wi_p, bf_p, wh_p, wo_p, bo_p)
    return out_p[:B, :O], hnew_p[:B, :H]


@functools.partial(jax.jit, static_argnames=("hidden_size", "time_tile"))
def _rnn_sequence_core(inputs, params, hidden_size, time_tile=8):
    """inputs: (T, B, I). Returns padded (final_output, hidden_sequence)."""
    wi, bi, wh, bh, wo, bo = params
    T, B, I = inputs.shape
    H = hidden_size
    O = wo.shape[1]

    Bp, Ip = _round_up(B, 8), _round_up(I, 128)
    Hp, Op = _round_up(H, 128), _round_up(O, 128)
    TT = max(1, min(time_tile, T))
    T_pad = _round_up(T, TT)

    wi_p, bf_p, wh_p, wo_p, bo_p = _pad_params(params, Ip, Hp, Op)
    h0_p = jnp.zeros((Bp, Hp), jnp.float32)
    x_p = jnp.pad(inputs, ((0, T_pad - T), (0, Bp - B), (0, Ip - I)))

    hseq_p = _rnn_recurrence(x_p, h0_p, wi_p, bf_p, wh_p, TT)
    out_p = _h2o(hseq_p[T - 1], wo_p, bo_p)     # h2o on final real step only
    return out_p, hseq_p


def rnn_forward_sequence(inputs, params, hidden_size, time_tile=8):
    """Equivalent of RNN.forward_sequence (forward values only).

    Returns (final_output, [(h0, h1), (h1, h2), ...]).
    """
    # TODO(synk): the .detach().requires_grad_() backward-graph surgery is
    # autograd-specific and has no Pallas/JAX-forward equivalent; only the
    # forward values are reproduced here.
    T, B, _ = inputs.shape
    O = params[4].shape[1]
    out_p, hseq_p = _rnn_sequence_core(inputs, params, hidden_size, time_tile)
    output = out_p[:B, :O]
    hs = hseq_p[:T, :B, :hidden_size]
    h0 = jnp.zeros((B, hidden_size), jnp.float32)
    prev = jnp.concatenate([h0[None], hs[:-1]], axis=0)   # single device op
    graph = [(prev[t], hs[t]) for t in range(T)]
    return output, graph


def init_params(key, input_size, hidden_size, output_size):
    """Deterministic init mirroring nn.Linear's U(-1/sqrt(fan_in), +).
    Weights stored pre-transposed to (in, out); biases as (1, out)."""
    ks = jax.random.split(key, 6)

    def lin(kw, kb, fan_in, fan_out):
        bound = 1.0 / jnp.sqrt(jnp.float32(fan_in))
        w = jax.random.uniform(kw, (fan_in, fan_out), jnp.float32, -bound, bound)
        b = jax.random.uniform(kb, (1, fan_out), jnp.float32, -bound, bound)
        return w, b

    wi, bi = lin(ks[0], ks[1], input_size, hidden_size)   # i2h
    wh, bh = lin(ks[2], ks[3], hidden_size, hidden_size)  # h2h
    wo, bo = lin(ks[4], ks[5], hidden_size, output_size)  # h2o
    return (wi, bi, wh, bh, wo, bo)


# ---------------------------------------------------------------------------
# Pure-JAX references for validation
# ---------------------------------------------------------------------------
def _reference_step(x, h, params):
    wi, bi, wh, bh, wo, bo = params
    h_new = jnp.tanh(x @ wi + bi + h @ wh + bh)
    return h_new @ wo + bo, h_new


def _reference_sequence(inputs, params, hidden_size):
    T, B, _ = inputs.shape
    h = jnp.zeros((B, hidden_size), jnp.float32)
    hs = []
    out = None
    for t in range(T):
        out, h = _reference_step(inputs[t], h, params)
        hs.append(h)
    return out, hs


if __name__ == "__main__":
    input_size, hidden_size, output_size = 16, 32, 8
    seq_len, batch = 10, 2     # seq_len not a multiple of time_tile on purpose
    time_tile = 4              # exercises time padding + cross-chunk h carry

    key = jax.random.PRNGKey(0)
    kp, kx, kh, ks = jax.random.split(key, 4)
    params = init_params(kp, input_size, hidden_size, output_size)

    # ---- single-step forward (dedicated fused kernel) ----
    x = jax.random.normal(kx, (batch, input_size), jnp.float32)
    h0 = jax.random.normal(kh, (batch, hidden_size), jnp.float32)
    out, h1 = jax.block_until_ready(rnn_forward(x, h0, params))

    ref_out, ref_h1 = _reference_step(x, h0, params)
    assert jnp.allclose(out, ref_out, atol=1e-4, rtol=1e-4)
    assert jnp.allclose(h1, ref_h1, atol=1e-4, rtol=1e-4)

    # ---- fused time-chunked sequence forward ----
    seq = jax.random.normal(ks, (seq_len, batch, input_size), jnp.float32)
    final_out, graph = rnn_forward_sequence(seq, params, hidden_size,
                                            time_tile=time_tile)
    final_out = jax.block_until_ready(final_out)
    assert final_out.shape == (batch, output_size)
    assert len(graph) == seq_len

    ref_final, ref_hs = _reference_sequence(seq, params, hidden_size)
    assert jnp.allclose(final_out, ref_final, atol=1e-4, rtol=1e-4)
    for t in range(seq_len):
        assert jnp.allclose(graph[t][1], ref_hs[t], atol=1e-4, rtol=1e-4)
    # consecutive graph entries chain correctly
    for t in range(1, seq_len):
        assert jnp.allclose(graph[t][0], graph[t - 1][1])

    print("KERNEL_OK")
</pallas_src>

<mosaic_0001>
module attributes {stable_mosaic.version = 11 : i64} {
  func.func @_rnn_step_kernel(%arg0: memref<8x128xf32, #tpu.memory_space<vmem>>, %arg1: memref<8x128xf32, #tpu.memory_space<vmem>>, %arg2: memref<128x128xf32, #tpu.memory_space<vmem>>, %arg3: memref<1x128xf32, #tpu.memory_space<vmem>>, %arg4: memref<128x128xf32, #tpu.memory_space<vmem>>, %arg5: memref<128x128xf32, #tpu.memory_space<vmem>>, %arg6: memref<1x128xf32, #tpu.memory_space<vmem>>, %arg7: memref<8x128xf32, #tpu.memory_space<vmem>>, %arg8: memref<8x128xf32, #tpu.memory_space<vmem>>) attributes {dimension_semantics = [], scalar_prefetch = 0 : i64, scratch_operands = 0 : i64, tpu.core_type = #tpu.core_type<tc>} {
    %c0 = arith.constant 0 : index
    %c0_0 = arith.constant 0 : index
    %0 = vector.load %arg0[%c0, %c0_0] : memref<8x128xf32, #tpu.memory_space<vmem>>, vector<8x128xf32>
    %c0_1 = arith.constant 0 : index
    %c0_2 = arith.constant 0 : index
    %1 = vector.load %arg2[%c0_1, %c0_2] : memref<128x128xf32, #tpu.memory_space<vmem>>, vector<128x128xf32>
    %cst = arith.constant dense<0.000000e+00> : vector<8x128xf32>
    %2 = tpu.matmul %0, %1, %cst {dimension_numbers = #tpu.dot_dimension_numbers<[1], [0], [0], [1], [0, 0, 1, 1], [], []>} : vector<8x128xf32>, vector<128x128xf32>, vector<8x128xf32> -> vector<8x128xf32>
    %c0_3 = arith.constant 0 : index
    %c0_4 = arith.constant 0 : index
    %3 = vector.load %arg3[%c0_3, %c0_4] : memref<1x128xf32, #tpu.memory_space<vmem>>, vector<1x128xf32>
    %4 = vector.broadcast %3 : vector<1x128xf32> to vector<8x128xf32>
    %5 = arith.addf %2, %4 : vector<8x128xf32>
    %c0_5 = arith.constant 0 : index
    %c0_6 = arith.constant 0 : index
    %6 = vector.load %arg1[%c0_5, %c0_6] : memref<8x128xf32, #tpu.memory_space<vmem>>, vector<8x128xf32>
    %c0_7 = arith.constant 0 : index
    %c0_8 = arith.constant 0 : index
    %7 = vector.load %arg4[%c0_7, %c0_8] : memref<128x128xf32, #tpu.memory_space<vmem>>, vector<128x128xf32>
    %cst_9 = arith.constant dense<0.000000e+00> : vector<8x128xf32>
    %8 = tpu.matmul %6, %7, %cst_9 {dimension_numbers = #tpu.dot_dimension_numbers<[1], [0], [0], [1], [0, 0, 1, 1], [], []>} : vector<8x128xf32>, vector<128x128xf32>, vector<8x128xf32> -> vector<8x128xf32>
    %9 = arith.addf %5, %8 : vector<8x128xf32>
    %10 = math.tanh %9 : vector<8x128xf32>
    %c0_10 = arith.constant 0 : index
    %c0_11 = arith.constant 0 : index
    %11 = vector.load %arg8[%c0_10, %c0_11] : memref<8x128xf32, #tpu.memory_space<vmem>>, vector<8x128xf32>
    tpu.vector_store %arg8[%c0_10, %c0_11], %10 {strides = array<i32>} : memref<8x128xf32, #tpu.memory_space<vmem>>, vector<8x128xf32>,
    %c0_12 = arith.constant 0 : index
    %c0_13 = arith.constant 0 : index
    %12 = vector.load %arg5[%c0_12, %c0_13] : memref<128x128xf32, #tpu.memory_space<vmem>>, vector<128x128xf32>
    %cst_14 = arith.constant dense<0.000000e+00> : vector<8x128xf32>
    %13 = tpu.matmul %10, %12, %cst_14 {dimension_numbers = #tpu.dot_dimension_numbers<[1], [0], [0], [1], [0, 0, 1, 1], [], []>} : vector<8x128xf32>, vector<128x128xf32>, vector<8x128xf32> -> vector<8x128xf32>
    %c0_15 = arith.constant 0 : index
    %c0_16 = arith.constant 0 : index
    %14 = vector.load %arg6[%c0_15, %c0_16] : memref<1x128xf32, #tpu.memory_space<vmem>>, vector<1x128xf32>
    %15 = vector.broadcast %14 : vector<1x128xf32> to vector<8x128xf32>
    %16 = arith.addf %13, %15 : vector<8x128xf32>
    %c0_17 = arith.constant 0 : index
    %c0_18 = arith.constant 0 : index
    %17 = vector.load %arg7[%c0_17, %c0_18] : memref<8x128xf32, #tpu.memory_space<vmem>>, vector<8x128xf32>
    tpu.vector_store %arg7[%c0_17, %c0_18], %16 {strides = array<i32>} : memref<8x128xf32, #tpu.memory_space<vmem>>, vector<8x128xf32>,
    return
  }
}

</mosaic_0001>

<llo_original>
// kernel: rnn_forward.1
$region0: #{rnn_forward.1}
  #allocation0 [shape = 'u32[]', space=smem, size = 0x4, offset = 0x4, fixed_abs, tag = 'smem constant byte address 0x4 - core index']
  #allocation1 [shape = 'u32[144,128]{1,0:T(1,128)}', space=vmem, size = 0x12000, scoped, tag = 'internal scratch']
  %s0 = inlined_call_operand.vmem [shape: f32[8,128], index: 0, kind: input, shape index: {}]
  %s1 = inlined_call_operand.vmem [shape: f32[8,128], index: 1, kind: input, shape index: {}]
  %s2 = inlined_call_operand.vmem [shape: f32[128,128], index: 2, kind: input, shape index: {}]
  %s3 = inlined_call_operand.vmem [shape: f32[1,128], index: 3, kind: input, shape index: {}]
  %s4 = inlined_call_operand.vmem [shape: f32[128,128], index: 4, kind: input, shape index: {}]
  %s5 = inlined_call_operand.vmem [shape: f32[128,128], index: 5, kind: input, shape index: {}]
  %s6 = inlined_call_operand.vmem [shape: f32[1,128], index: 6, kind: input, shape index: {}]
  %s7 = inlined_call_operand.vmem [shape: f32[8,128], index: 7, kind: output, shape index: {0}]
  %s8 = inlined_call_operand.vmem [shape: f32[8,128], index: 8, kind: output, shape index: {1}]
  %9 = xla_tuple %s7, %s8
  %s10 = sld [smem:[#allocation0]]
  $region46: #{rnn_forward.1} parent=0
    _
  %s12 = ssub.s32 1, %s10
  %s13 = scalar_select 0, %s12, %s10
  // Predicated region
  $region2: #{rnn_forward.1} parent=0 // pred_check
    _
  $region3: #{rnn_forward.1} parent=0 // pred_check_branch
    %15 = sbr.rel (0) target = $region5
  $region4: #{rnn_forward.1} parent=0 // pred_region
    _
  $region5: #{rnn_forward.1} parent=0 // pred_fallthru
    _
  // Predicated region
  $region6: #{rnn_forward.1} parent=0 // pred_check
    _
  $region7: #{rnn_forward.1} parent=0 // pred_check_branch
    %17 = sbr.rel (0) target = $region9
  $region8: #{rnn_forward.1} parent=0 // pred_region
    _
  $region9: #{rnn_forward.1} parent=0 // pred_fallthru
    _
  // Predicated region
  $region10: #{rnn_forward.1} parent=0 // pred_check
    _
  $region11: #{rnn_forward.1} parent=0 // pred_check_branch
    %19 = sbr.rel (0) target = $region13
  $region12: #{rnn_forward.1} parent=0 // pred_region
    _
  $region13: #{rnn_forward.1} parent=0 // pred_fallthru
    _
  // Predicated region
  $region14: #{rnn_forward.1} parent=0 // pred_check
    _
  $region15: #{rnn_forward.1} parent=0 // pred_check_branch
    %21 = sbr.rel (0) target = $region17
  $region16: #{rnn_forward.1} parent=0 // pred_region
    _
  $region17: #{rnn_forward.1} parent=0 // pred_fallthru
    _
  // Predicated region
  $region18: #{rnn_forward.1} parent=0 // pred_check
    _
  $region19: #{rnn_forward.1} parent=0 // pred_check_branch
    %23 = sbr.rel (0) target = $region21
  $region20: #{rnn_forward.1} parent=0 // pred_region
    _
  $region21: #{rnn_forward.1} parent=0 // pred_fallthru
    _
  // Predicated region
  $region22: #{rnn_forward.1} parent=0 // pred_check
    _
  $region23: #{rnn_forward.1} parent=0 // pred_check_branch
    %25 = sbr.rel (0) target = $region25
  $region24: #{rnn_forward.1} parent=0 // pred_region
    _
  $region25: #{rnn_forward.1} parent=0 // pred_fallthru
    _
  // Predicated region
  $region26: #{rnn_forward.1} parent=0 // pred_check
    _
  $region27: #{rnn_forward.1} parent=0 // pred_check_branch
    %27 = sbr.rel (0) target = $region29
  $region28: #{rnn_forward.1} parent=0 // pred_region
    _
  $region29: #{rnn_forward.1} parent=0 // pred_fallthru
    _
  %v28 = vld [vmem:[%s0] sm:$0xff]
  %v29 = vld [vmem:[%s2] sm:$0xff]
  %v30 = vld [vmem:[%s2 + $0x8] sm:$0xff]
  %v31 = vld [vmem:[%s2 + $0x10] sm:$0xff]
  %v32 = vld [vmem:[%s2 + $0x18] sm:$0xff]
  %v33 = vld [vmem:[%s2 + $0x20] sm:$0xff]
  %v34 = vld [vmem:[%s2 + $0x28] sm:$0xff]
  %v35 = vld [vmem:[%s2 + $0x30] sm:$0xff]
  %v36 = vld [vmem:[%s2 + $0x38] sm:$0xff]
  %v37 = vld [vmem:[%s2 + $0x40] sm:$0xff]
  %v38 = vld [vmem:[%s2 + $0x48] sm:$0xff]
  %v39 = vld [vmem:[%s2 + $0x50] sm:$0xff]
  %v40 = vld [vmem:[%s2 + $0x58] sm:$0xff]
  %v41 = vld [vmem:[%s2 + $0x60] sm:$0xff]
  %v42 = vld [vmem:[%s2 + $0x68] sm:$0xff]
  %v43 = vld [vmem:[%s2 + $0x70] sm:$0xff]
  %v44 = vld [vmem:[%s2 + $0x78] sm:$0xff]
  %v45 = vld [vmem:[%s3] sm:$0x1]
  %v47 = vlaneseq
  %v48 = vshrl.u32 %v47, 7
  %v49 = vsub.s32 0, %v48
  %v50 = vrot.slane %v45, %v49
  %52 = vmatprep.subr.mxu0 0.0
  %53 = vmatpush1.msra.mxu0 %v29
  %54 = vmatprep.subr.mxu0 0.0
  %55 = vmatpush1.msra.mxu0 %v30
  %56 = vmatprep.subr.mxu0 0.0
  %57 = vmatpush1.msra.mxu0 %v31
  %58 = vmatprep.subr.mxu0 0.0
  %59 = vmatpush1.msra.mxu0 %v32
  %60 = vmatprep.subr.mxu0 0.0
  %61 = vmatpush1.msra.mxu0 %v33
  %62 = vmatprep.subr.mxu0 0.0
  %63 = vmatpush1.msra.mxu0 %v34
  %64 = vmatprep.subr.mxu0 0.0
  %65 = vmatpush1.msra.mxu0 %v35
  %66 = vmatprep.subr.mxu0 0.0
  %67 = vmatpush1.msra.mxu0 %v36
  %68 = vmatprep.subr.mxu0 0.0
  %69 = vmatpush1.msra.mxu0 %v37
  %70 = vmatprep.subr.mxu0 0.0
  %71 = vmatpush1.msra.mxu0 %v38
  %72 = vmatprep.subr.mxu0 0.0
  %73 = vmatpush1.msra.mxu0 %v39
  %74 = vmatprep.subr.mxu0 0.0
  %75 = vmatpush1.msra.mxu0 %v40
  %76 = vmatprep.subr.mxu0 0.0
  %77 = vmatpush1.msra.mxu0 %v41
  %78 = vmatprep.subr.mxu0 0.0
  %79 = vmatpush1.msra.mxu0 %v42
  %80 = vmatprep.subr.mxu0 0.0
  %81 = vmatpush1.msra.mxu0 %v43
  %82 = vmatprep.subr.mxu0 0.0
  %83 = vmatpush1.msra.mxu0 %v44
  %84 = vmatprep.subr.mxu0 0.0
  %85 = vmatpush1.msra.mxu0 0.0
  %86 = vmatprep.subr.mxu0 0.0
  %87 = vmatpush1.msra.mxu0 0.0
  %88 = vmatprep.subr.mxu0 0.0
  %89 = vmatpush1.msra.mxu0 0.0
  %90 = vmatprep.subr.mxu0 0.0
  %91 = vmatpush1.msra.mxu0 0.0
  %92 = vmatprep.subr.mxu0 0.0
  %93 = vmatpush1.msra.mxu0 0.0
  %94 = vmatprep.subr.mxu0 0.0
  %95 = vmatpush1.msra.mxu0 0.0
  %96 = vmatprep.subr.mxu0 0.0
  %97 = vmatpush1.msra.mxu0 0.0
  %98 = vmatprep.subr.mxu0 0.0
  %99 = vmatpush1.msra.mxu0 0.0
  %100 = vmatprep.subr.mxu0 0.0
  %101 = vmatpush1.msra.mxu0 0.0
  %102 = vmatprep.subr.mxu0 0.0
  %103 = vmatpush1.msra.mxu0 0.0
  %104 = vmatprep.subr.mxu0 0.0
  %105 = vmatpush1.msra.mxu0 0.0
  %106 = vmatprep.subr.mxu0 0.0
  %107 = vmatpush1.msra.mxu0 0.0
  %108 = vmatprep.subr.mxu0 0.0
  %109 = vmatpush1.msra.mxu0 0.0
  %110 = vmatprep.subr.mxu0 0.0
  %111 = vmatpush1.msra.mxu0 0.0
  %112 = vmatprep.subr.mxu0 0.0
  %113 = vmatpush1.msra.mxu0 0.0
  %114 = vmatprep.subr.mxu0 0.0
  %115 = vmatpush1.msra.mxu0 0.0
  %116 = vmatprep.mubr.f32.mxu0 0.0
  %117 = vmatmul.mubr.f32.gmra.mrb[0].mxu0 %v28
  %v118 = vpop.f32.mrb[0].mxu0
  %v119 = vadd.f32 %v50, %v118
  %v120 = vpop.f32.mrb[0].mxu0
  %121 = vdwg.mxu0
  %v122 = vld [vmem:[%s1] sm:$0xff]
  %v123 = vld [vmem:[%s4] sm:$0xff]
  %v124 = vld [vmem:[%s4 + $0x8] sm:$0xff]
  %v125 = vld [vmem:[%s4 + $0x10] sm:$0xff]
  %v126 = vld [vmem:[%s4 + $0x18] sm:$0xff]
  %v127 = vld [vmem:[%s4 + $0x20] sm:$0xff]
  %v128 = vld [vmem:[%s4 + $0x28] sm:$0xff]
  %v129 = vld [vmem:[%s4 + $0x30] sm:$0xff]
  %v130 = vld [vmem:[%s4 + $0x38] sm:$0xff]
  %v131 = vld [vmem:[%s4 + $0x40] sm:$0xff]
  %v132 = vld [vmem:[%s4 + $0x48] sm:$0xff]
  %v133 = vld [vmem:[%s4 + $0x50] sm:$0xff]
  %v134 = vld [vmem:[%s4 + $0x58] sm:$0xff]
  %v135 = vld [vmem:[%s4 + $0x60] sm:$0xff]
  %v136 = vld [vmem:[%s4 + $0x68] sm:$0xff]
  %v137 = vld [vmem:[%s4 + $0x70] sm:$0xff]
  %v138 = vld [vmem:[%s4 + $0x78] sm:$0xff]
  %139 = vmatprep.subr.mxu0 0.0
  %140 = vmatpush1.msra.mxu0 %v123
  %141 = vmatprep.subr.mxu0 0.0
  %142 = vmatpush1.msra.mxu0 %v124
  %143 = vmatprep.subr.mxu0 0.0
  %144 = vmatpush1.msra.mxu0 %v125
  %145 = vmatprep.subr.mxu0 0.0
  %146 = vmatpush1.msra.mxu0 %v126
  %147 = vmatprep.subr.mxu0 0.0
  %148 = vmatpush1.msra.mxu0 %v127
  %149 = vmatprep.subr.mxu0 0.0
  %150 = vmatpush1.msra.mxu0 %v128
  %151 = vmatprep.subr.mxu0 0.0
  %152 = vmatpush1.msra.mxu0 %v129
  %153 = vmatprep.subr.mxu0 0.0
  %154 = vmatpush1.msra.mxu0 %v130
  %155 = vmatprep.subr.mxu0 0.0
  %156 = vmatpush1.msra.mxu0 %v131
  %157 = vmatprep.subr.mxu0 0.0
  %158 = vmatpush1.msra.mxu0 %v132
  %159 = vmatprep.subr.mxu0 0.0
  %160 = vmatpush1.msra.mxu0 %v133
  %161 = vmatprep.subr.mxu0 0.0
  %162 = vmatpush1.msra.mxu0 %v134
  %163 = vmatprep.subr.mxu0 0.0
  %164 = vmatpush1.msra.mxu0 %v135
  %165 = vmatprep.subr.mxu0 0.0
  %166 = vmatpush1.msra.mxu0 %v136
  %167 = vmatprep.subr.mxu0 0.0
  %168 = vmatpush1.msra.mxu0 %v137
  %169 = vmatprep.subr.mxu0 0.0
  %170 = vmatpush1.msra.mxu0 %v138
  %171 = vmatprep.subr.mxu0 0.0
  %172 = vmatpush1.msra.mxu0 0.0
  %173 = vmatprep.subr.mxu0 0.0
  %174 = vmatpush1.msra.mxu0 0.0
  %175 = vmatprep.subr.mxu0 0.0
  %176 = vmatpush1.msra.mxu0 0.0
  %177 = vmatprep.subr.mxu0 0.0
  %178 = vmatpush1.msra.mxu0 0.0
  %179 = vmatprep.subr.mxu0 0.0
  %180 = vmatpush1.msra.mxu0 0.0
  %181 = vmatprep.subr.mxu0 0.0
  %182 = vmatpush1.msra.mxu0 0.0
  %183 = vmatprep.subr.mxu0 0.0
  %184 = vmatpush1.msra.mxu0 0.0
  %185 = vmatprep.subr.mxu0 0.0
  %186 = vmatpush1.msra.mxu0 0.0
  %187 = vmatprep.subr.mxu0 0.0
  %188 = vmatpush1.msra.mxu0 0.0
  %189 = vmatprep.subr.mxu0 0.0
  %190 = vmatpush1.msra.mxu0 0.0
  %191 = vmatprep.subr.mxu0 0.0
  %192 = vmatpush1.msra.mxu0 0.0
  %193 = vmatprep.subr.mxu0 0.0
  %194 = vmatpush1.msra.mxu0 0.0
  %195 = vmatprep.subr.mxu0 0.0
  %196 = vmatpush1.msra.mxu0 0.0
  %197 = vmatprep.subr.mxu0 0.0
  %198 = vmatpush1.msra.mxu0 0.0
  %199 = vmatprep.subr.mxu0 0.0
  %200 = vmatpush1.msra.mxu0 0.0
  %201 = vmatprep.subr.mxu0 0.0
  %202 = vmatpush1.msra.mxu0 0.0
  %203 = vmatprep.mubr.f32.mxu0 0.0
  %204 = vmatmul.mubr.f32.gmra.mrb[0].mxu0 %v122
  %v205 = vpop.f32.mrb[0].mxu0
  %v206 = vadd.f32 0.0, %v205
  %v207 = vpop.f32.mrb[0].mxu0
  %208 = vdwg.mxu0
  %v209 = vadd.f32 %v119, %v206
  %v210 = vtanh.pop %v209
  %211 = vst [vmem:[%s8] sm:$0xff] %v210
  %v212 = vld [vmem:[%s5] sm:$0xff]
  %v213 = vld [vmem:[%s5 + $0x8] sm:$0xff]
  %v214 = vld [vmem:[%s5 + $0x10] sm:$0xff]
  %v215 = vld [vmem:[%s5 + $0x18] sm:$0xff]
  %v216 = vld [vmem:[%s5 + $0x20] sm:$0xff]
  %v217 = vld [vmem:[%s5 + $0x28] sm:$0xff]
  %v218 = vld [vmem:[%s5 + $0x30] sm:$0xff]
  %v219 = vld [vmem:[%s5 + $0x38] sm:$0xff]
  %v220 = vld [vmem:[%s5 + $0x40] sm:$0xff]
  %v221 = vld [vmem:[%s5 + $0x48] sm:$0xff]
  %v222 = vld [vmem:[%s5 + $0x50] sm:$0xff]
  %v223 = vld [vmem:[%s5 + $0x58] sm:$0xff]
  %v224 = vld [vmem:[%s5 + $0x60] sm:$0xff]
  %v225 = vld [vmem:[%s5 + $0x68] sm:$0xff]
  %v226 = vld [vmem:[%s5 + $0x70] sm:$0xff]
  %v227 = vld [vmem:[%s5 + $0x78] sm:$0xff]
  %v228 = vld [vmem:[%s6] sm:$0x1]
  %v230 = vlaneseq
  %v231 = vshrl.u32 %v230, 7
  %v232 = vsub.s32 0, %v231
  %v233 = vrot.slane %v228, %v232
  %235 = vmatprep.subr.mxu0 0.0
  %236 = vmatpush1.msra.mxu0 %v212
  %237 = vmatprep.subr.mxu0 0.0
  %238 = vmatpush1.msra.mxu0 %v213
  %239 = vmatprep.subr.mxu0 0.0
  %240 = vmatpush1.msra.mxu0 %v214
  %241 = vmatprep.subr.mxu0 0.0
  %242 = vmatpush1.msra.mxu0 %v215
  %243 = vmatprep.subr.mxu0 0.0
  %244 = vmatpush1.msra.mxu0 %v216
  %245 = vmatprep.subr.mxu0 0.0
  %246 = vmatpush1.msra.mxu0 %v217
  %247 = vmatprep.subr.mxu0 0.0
  %248 = vmatpush1.msra.mxu0 %v218
  %249 = vmatprep.subr.mxu0 0.0
  %250 = vmatpush1.msra.mxu0 %v219
  %251 = vmatprep.subr.mxu0 0.0
  %252 = vmatpush1.msra.mxu0 %v220
  %253 = vmatprep.subr.mxu0 0.0
  %254 = vmatpush1.msra.mxu0 %v221
  %255 = vmatprep.subr.mxu0 0.0
  %256 = vmatpush1.msra.mxu0 %v222
  %257 = vmatprep.subr.mxu0 0.0
  %258 = vmatpush1.msra.mxu0 %v223
  %259 = vmatprep.subr.mxu0 0.0
  %260 = vmatpush1.msra.mxu0 %v224
  %261 = vmatprep.subr.mxu0 0.0
  %262 = vmatpush1.msra.mxu0 %v225
  %263 = vmatprep.subr.mxu0 0.0
  %264 = vmatpush1.msra.mxu0 %v226
  %265 = vmatprep.subr.mxu0 0.0
  %266 = vmatpush1.msra.mxu0 %v227
  %267 = vmatprep.subr.mxu0 0.0
  %268 = vmatpush1.msra.mxu0 0.0
  %269 = vmatprep.subr.mxu0 0.0
  %270 = vmatpush1.msra.mxu0 0.0
  %271 = vmatprep.subr.mxu0 0.0
  %272 = vmatpush1.msra.mxu0 0.0
  %273 = vmatprep.subr.mxu0 0.0
  %274 = vmatpush1.msra.mxu0 0.0
  %275 = vmatprep.subr.mxu0 0.0
  %276 = vmatpush1.msra.mxu0 0.0
  %277 = vmatprep.subr.mxu0 0.0
  %278 = vmatpush1.msra.mxu0 0.0
  %279 = vmatprep.subr.mxu0 0.0
  %280 = vmatpush1.msra.mxu0 0.0
  %281 = vmatprep.subr.mxu0 0.0
  %282 = vmatpush1.msra.mxu0 0.0
  %283 = vmatprep.subr.mxu0 0.0
  %284 = vmatpush1.msra.mxu0 0.0
  %285 = vmatprep.subr.mxu0 0.0
  %286 = vmatpush1.msra.mxu0 0.0
  %287 = vmatprep.subr.mxu0 0.0
  %288 = vmatpush1.msra.mxu0 0.0
  %289 = vmatprep.subr.mxu0 0.0
  %290 = vmatpush1.msra.mxu0 0.0
  %291 = vmatprep.subr.mxu0 0.0
  %292 = vmatpush1.msra.mxu0 0.0
  %293 = vmatprep.subr.mxu0 0.0
  %294 = vmatpush1.msra.mxu0 0.0
  %295 = vmatprep.subr.mxu0 0.0
  %296 = vmatpush1.msra.mxu0 0.0
  %297 = vmatprep.subr.mxu0 0.0
  %298 = vmatpush1.msra.mxu0 0.0
  %299 = vmatprep.mubr.f32.mxu0 0.0
  %300 = vmatmul.mubr.f32.gmra.mrb[0].mxu0 %v210
  %v301 = vpop.f32.mrb[0].mxu0
  %v302 = vadd.f32 %v233, %v301
  %v303 = vpop.f32.mrb[0].mxu0
  %304 = vdwg.mxu0
  %305 = vst [vmem:[%s7] sm:$0xff] %v302
  // Predicated region
  $region30: #{rnn_forward.1} parent=0 // pred_check
    _
  $region31: #{rnn_forward.1} parent=0 // pred_check_branch
    %307 = sbr.rel (0) target = $region33
  $region32: #{rnn_forward.1} parent=0 // pred_region
    _
  $region33: #{rnn_forward.1} parent=0 // pred_fallthru
    _
  // Predicated region
  $region34: #{rnn_forward.1} parent=0 // pred_check
    _
  $region35: #{rnn_forward.1} parent=0 // pred_check_branch
    %309 = sbr.rel (0) target = $region37
  $region36: #{rnn_forward.1} parent=0 // pred_region
    _
  $region37: #{rnn_forward.1} parent=0 // pred_fallthru
    _
  // Predicated region
  $region38: #{rnn_forward.1} parent=0 // pred_check
    _
  $region39: #{rnn_forward.1} parent=0 // pred_check_branch
    %311 = sbr.rel (0) target = $region41
  $region40: #{rnn_forward.1} parent=0 // pred_region
    _
  $region41: #{rnn_forward.1} parent=0 // pred_fallthru
    _
  // Predicated region
  $region42: #{rnn_forward.1} parent=0 // pred_check
    _
  $region43: #{rnn_forward.1} parent=0 // pred_check_branch
    %313 = sbr.rel (0) target = $region45
  $region44: #{rnn_forward.1} parent=0 // pred_region
    _
  $region45: #{rnn_forward.1} parent=0 // pred_fallthru
    _

</llo_original>
